<compile_context>
chip_gen: v7x
topology: tpu7x:2x2x1
jax: 0.10.0
libtpu: 0.0.40
codegen_flags: <defaults>
</compile_context>

<pallas_src>
import functools
import math

import numpy as np
import jax
import jax.numpy as jnp
from jax import lax
from jax.experimental import pallas as pl
from jax.experimental.pallas import tpu as pltpu


# ----------------------------------------------------------------------------
# Pallas kernel: one (image, output-row-tile) step, all C channels per step.
# ----------------------------------------------------------------------------
def _transform_kernel(shift_ref, scale_ref, img_ref, ry_ref, rxT_ref, out_ref,
                      *, tm, new_h, new_w):
    # shift_ref / scale_ref: (C,) in SMEM;  shift = -mean/std, scale = 1/std
    r = pl.program_id(1)
    C = img_ref.shape[1]
    w_out = rxT_ref.shape[1]

    # Row-resize matrix tile for this output-row tile (Ry is fully resident).
    row0 = pl.multiple_of(r * tm, tm)
    ry = ry_ref[pl.ds(row0, tm), :]                       # (tm, H) bf16
    rxT = rxT_ref[...]                                    # (W, W_pad) bf16

    # Valid-region mask (rows/cols beyond the resized extent -> zero padding).
    row = row0 + lax.broadcasted_iota(jnp.int32, (tm, w_out), 0)
    col = lax.broadcasted_iota(jnp.int32, (tm, w_out), 1)
    valid = (row < new_h) & (col < new_w)

    for c in range(C):                                    # unrolled, C is small
        x = img_ref[0, c]                                 # (H, W) bf16 (pre-cast)
        tmp = jnp.dot(ry, x, preferred_element_type=jnp.float32)        # (tm, W)
        y = jnp.dot(tmp.astype(jnp.bfloat16), rxT,
                    preferred_element_type=jnp.float32)                 # (tm, W_pad)
        # Normalization folded after the resize (linearity of bilinear interp).
        out = jnp.where(valid, y * scale_ref[c] + shift_ref[c], 0.0)
        out_ref[0, c] = out.astype(out_ref.dtype)


# ----------------------------------------------------------------------------
# Host-side interpolation matrix (matches F.interpolate bilinear,
# align_corners=False, recompute_scale_factor=True).  Rows >= out_size are zero,
# implementing the batch_images zero padding.
# ----------------------------------------------------------------------------
def _interp_matrix(in_size, out_size, pad_to):
    scale = np.float32(in_size) / np.float32(out_size)
    dst = np.arange(out_size, dtype=np.float32)
    src = (dst + 0.5) * scale - 0.5
    src = np.maximum(src, 0.0)                 # align_corners=False clamp
    x0 = np.floor(src).astype(np.int64)
    x0 = np.minimum(x0, in_size - 1)
    x1 = np.minimum(x0 + 1, in_size - 1)
    lam = (src - x0).astype(np.float32)
    R = np.zeros((pad_to, in_size), dtype=np.float32)
    rows = np.arange(out_size)
    np.add.at(R, (rows, x0), 1.0 - lam)
    np.add.at(R, (rows, x1), lam)
    return R


# ----------------------------------------------------------------------------
# Generation-aware knobs.
# ----------------------------------------------------------------------------
def _tile_row_cap():
    # v5e's MXU is 4x128x128: tm=128 already saturates M and halves VMEM pressure.
    try:
        kind = jax.devices()[0].device_kind.lower()
        if "v5 lite" in kind or "v5e" in kind or "v5lite" in kind:
            return 128
    except Exception:
        pass
    return 256


def _vmem_capacity_bytes():
    try:
        return int(pltpu.get_tpu_info().vmem_capacity_bytes)
    except Exception:
        return 64 << 20        # conservative (v7x-sized) fallback


def _pick_row_tile(h_pad, cap):
    """Returns (tm, h_store). Prefers an exact divisor of h_pad (no partial
    blocks / no slice-back); otherwise uses the cap and pads the stored H."""
    if h_pad <= cap:
        return h_pad, h_pad
    lo = max(cap // 2, 8)
    for t in range(cap, lo - 1, -1):
        if h_pad % t == 0 and t % 8 == 0:
            return t, h_pad
    n = -(-h_pad // cap)
    return cap, n * cap        # stored H padded; wrapper slices back once


# ----------------------------------------------------------------------------
# Wrapper: forward pass of GeneralizedRCNNTransform (eval mode, targets=None).
# ----------------------------------------------------------------------------
def generalized_rcnn_transform_forward(
    images,                      # (N, C, H, W) float, all images same size
    image_mean, image_std,       # lists of length C
    min_size, max_size,          # ints (eval mode: uses min_size[-1])
    size_divisible=32,
):
    N, C, H, W = images.shape
    out_dtype = jnp.float32 if images.dtype == jnp.bfloat16 else images.dtype

    # --- resize scale computation (eval mode: size = min_size[-1]) ----------
    if not isinstance(min_size, (list, tuple)):
        min_size = (min_size,)
    self_min_size = float(min_size[-1])
    self_max_size = float(max_size)
    scale = min(self_min_size / float(min(H, W)), self_max_size / float(max(H, W)))
    new_h = int(math.floor(H * scale))
    new_w = int(math.floor(W * scale))

    # --- batch_images padded shape -------------------------------------------
    stride = float(size_divisible)
    H_pad = int(math.ceil(new_h / stride) * stride)
    W_pad = int(math.ceil(new_w / stride) * stride)

    # --- output-row tile -------------------------------------------------------
    cap = _tile_row_cap()
    tm, H_store = _pick_row_tile(H_pad, cap)
    n_row_tiles = H_store // tm

    # --- static parameters -----------------------------------------------------
    mean = np.asarray(image_mean, dtype=np.float32)
    std = np.asarray(image_std, dtype=np.float32)
    scale_param = jnp.asarray(1.0 / std)          # (C,)
    shift_param = jnp.asarray(-mean / std)        # (C,)
    Ry = jnp.asarray(_interp_matrix(H, new_h, H_store), dtype=jnp.bfloat16)    # (H_store, H)
    RxT = jnp.asarray(_interp_matrix(W, new_w, W_pad).T, dtype=jnp.bfloat16)   # (W, W_pad)

    # Pre-cast to bf16 once in the wrapper (halves HBM read + VMEM plane).
    imgs_in = images if images.dtype == jnp.bfloat16 else images.astype(jnp.bfloat16)

    # --- VMEM budget & cost estimate -------------------------------------------
    F32, BF16 = 4, 2
    vmem_est = (2 * C * H * W * BF16          # image block (double buffered)
                + 2 * H_store * H * BF16      # Ry resident (spare buffer counted)
                + 2 * W * W_pad * BF16        # Rx^T resident
                + 2 * C * tm * W_pad * F32    # output block (double buffered)
                + tm * H * BF16               # Ry row slice
                + tm * W * (F32 + BF16)       # first-matmul result (+ bf16 copy)
                + 3 * tm * W_pad * F32)       # y, masked out, iota temps
    vmem_cap = int(_vmem_capacity_bytes() * 0.85)
    vmem_limit = int(min(max(int(vmem_est * 1.4) + (8 << 20), 32 << 20), vmem_cap))

    flops = 2 * N * C * (H_store * H * W + H_store * W * W_pad)
    bytes_accessed = (N * C * H * W * BF16 + N * C * H_store * W_pad * F32
                      + int(Ry.size) * BF16 + int(RxT.size) * BF16)

    kernel = functools.partial(_transform_kernel, tm=tm, new_h=new_h, new_w=new_w)

    out = pl.pallas_call(
        kernel,
        out_shape=jax.ShapeDtypeStruct((N, C, H_store, W_pad), out_dtype),
        grid=(N, n_row_tiles),
        in_specs=[
            pl.BlockSpec(memory_space=pltpu.MemorySpace.SMEM),                 # shift (C,)
            pl.BlockSpec(memory_space=pltpu.MemorySpace.SMEM),                 # scale (C,)
            pl.BlockSpec((1, C, H, W), lambda n, r: (n, 0, 0, 0)),             # bf16 image, resident over r
            pl.BlockSpec((H_store, H), lambda n, r: (0, 0)),                   # Ry, fully resident
            pl.BlockSpec((W, W_pad), lambda n, r: (0, 0)),                     # Rx^T, fully resident
        ],
        out_specs=pl.BlockSpec((1, C, tm, W_pad), lambda n, r: (n, 0, r, 0)),
        compiler_params=pltpu.CompilerParams(
            dimension_semantics=("parallel", "arbitrary"),
            vmem_limit_bytes=vmem_limit),
        cost_estimate=pl.CostEstimate(flops=flops, transcendentals=0,
                                      bytes_accessed=bytes_accessed),
    )(shift_param, scale_param, imgs_in, Ry, RxT)

    if H_store != H_pad:     # rare fallback path (no divisor tile found)
        out = out[:, :, :H_pad, :]

    image_sizes = [(new_h, new_w)] * N   # ImageList.image_sizes
    return out, image_sizes


# ----------------------------------------------------------------------------
# Pure-JAX f32 reference (same semantics, no Pallas) for the correctness check.
# ----------------------------------------------------------------------------
def _reference(images, image_mean, image_std, min_size, max_size, size_divisible=32):
    N, C, H, W = images.shape
    mean = jnp.asarray(image_mean, dtype=images.dtype)[None, :, None, None]
    std = jnp.asarray(image_std, dtype=images.dtype)[None, :, None, None]
    xn = (images - mean) / std
    scale = min(float(min_size) / min(H, W), float(max_size) / max(H, W))
    new_h, new_w = int(math.floor(H * scale)), int(math.floor(W * scale))
    H_pad = int(math.ceil(new_h / size_divisible) * size_divisible)
    W_pad = int(math.ceil(new_w / size_divisible) * size_divisible)
    Ry = jnp.asarray(_interp_matrix(H, new_h, H_pad))
    Rx = jnp.asarray(_interp_matrix(W, new_w, W_pad))
    return jnp.einsum('ph,nchw,qw->ncpq', Ry, xn, Rx)


if __name__ == "__main__":
    key = jax.random.PRNGKey(0)
    image_mean = [0.485, 0.456, 0.406]
    image_std = [0.229, 0.224, 0.225]

    # --- small test: upscale 16x16 -> 24x24, padded to 32x32 (single row tile) ---
    N, C, H, W = 2, 3, 16, 16
    images = jax.random.uniform(key, (N, C, H, W), dtype=jnp.float32)
    out, image_sizes = generalized_rcnn_transform_forward(
        images, image_mean, image_std, 24, 32, 32)
    out = jax.block_until_ready(out)
    ref = _reference(images, image_mean, image_std, 24, 32, 32)
    # bf16 MXU operands (f32 accumulate): loosen tolerance vs. the f32 reference.
    np.testing.assert_allclose(np.asarray(out), np.asarray(ref), rtol=2e-2, atol=8e-2)
    assert out.shape == (N, C, 32, 32)
    assert image_sizes == [(24, 24), (24, 24)]

    # --- multi-row-tile test: 320x320 -> 300x300, padded to 320x320 (tm=160x2) ---
    key2 = jax.random.PRNGKey(0)
    images2 = jax.random.uniform(key2, (1, 3, 320, 320), dtype=jnp.float32)
    out2, image_sizes2 = generalized_rcnn_transform_forward(
        images2, image_mean, image_std, 300, 600, 32)
    out2 = jax.block_until_ready(out2)
    ref2 = _reference(images2, image_mean, image_std, 300, 600, 32)
    np.testing.assert_allclose(np.asarray(out2), np.asarray(ref2), rtol=2e-2, atol=8e-2)
    assert out2.shape == (1, 3, 320, 320)
    assert image_sizes2 == [(300, 300)]

    print("KERNEL_OK")
</pallas_src>

<mosaic_0001>
module attributes {stable_mosaic.version = 11 : i64} {
  func.func @_transform_kernel(%arg0: i32, %arg1: i32, %arg2: memref<3xf32, #tpu.memory_space<smem>>, %arg3: memref<3xf32, #tpu.memory_space<smem>>, %arg4: memref<1x3x16x16xbf16, #tpu.memory_space<vmem>>, %arg5: memref<32x16xbf16, #tpu.memory_space<vmem>>, %arg6: memref<16x32xbf16, #tpu.memory_space<vmem>>, %arg7: memref<1x3x32x32xf32, #tpu.memory_space<vmem>>) attributes {dimension_semantics = [#tpu.dimension_semantics<parallel>, #tpu.dimension_semantics<arbitrary>], iteration_bounds = array<i64: 2, 1>, scalar_prefetch = 0 : i64, scratch_operands = 0 : i64, tpu.core_type = #tpu.core_type<tc>, window_params = [{transform_indices = @transform_0, window_bounds = array<i64: 3>}, {transform_indices = @transform_1, window_bounds = array<i64: 3>}, {transform_indices = @transform_2, window_bounds = array<i64: 1, 3, 16, 16>}, {pipeline_mode = #tpu.pipeline_mode<synchronous>, transform_indices = @transform_3, window_bounds = array<i64: 32, 16>}, {pipeline_mode = #tpu.pipeline_mode<synchronous>, transform_indices = @transform_4, window_bounds = array<i64: 16, 32>}, {transform_indices = @transform_5, window_bounds = array<i64: 1, 3, 32, 32>}]} {
    %c32_i32 = arith.constant 32 : i32
    %0 = arith.muli %arg1, %c32_i32 : i32
    %1 = tpu.assume_multiple %0, 32 : i32
    %2 = arith.index_cast %1 : i32 to index
    %c0 = arith.constant 0 : index
    %3 = vector.load %arg5[%2, %c0] : memref<32x16xbf16, #tpu.memory_space<vmem>>, vector<32x16xbf16>
    %c0_0 = arith.constant 0 : index
    %c0_1 = arith.constant 0 : index
    %4 = vector.load %arg6[%c0_0, %c0_1] : memref<16x32xbf16, #tpu.memory_space<vmem>>, vector<16x32xbf16>
    %5 = tpu.iota {dimensions = array<i32: 0>} : vector<32x32xi32>
    %6 = vector.broadcast %1 : i32 to vector<32x32xi32>
    %7 = arith.addi %6, %5 : vector<32x32xi32>
    %8 = tpu.iota {dimensions = array<i32: 1>} : vector<32x32xi32>
    %c24_i32 = arith.constant 24 : i32
    %9 = vector.broadcast %c24_i32 : i32 to vector<32x32xi32>
    %10 = arith.cmpi slt, %7, %9 : vector<32x32xi32>
    %c24_i32_2 = arith.constant 24 : i32
    %11 = vector.broadcast %c24_i32_2 : i32 to vector<32x32xi32>
    %12 = arith.cmpi slt, %8, %11 : vector<32x32xi32>
    %13 = arith.andi %10, %12 : vector<32x32xi1>
    %c0_3 = arith.constant 0 : index
    %c0_4 = arith.constant 0 : index
    %c0_5 = arith.constant 0 : index
    %c0_6 = arith.constant 0 : index
    %14 = vector.load %arg4[%c0_3, %c0_4, %c0_5, %c0_6] : memref<1x3x16x16xbf16, #tpu.memory_space<vmem>>, vector<1x1x16x16xbf16>
    %15 = vector.shape_cast %14 : vector<1x1x16x16xbf16> to vector<16x16xbf16>
    %cst = arith.constant dense<0.000000e+00> : vector<32x16xf32>
    %16 = tpu.matmul %3, %15, %cst {dimension_numbers = #tpu.dot_dimension_numbers<[1], [0], [0], [1], [0, 0, 1, 1], [], []>} : vector<32x16xbf16>, vector<16x16xbf16>, vector<32x16xf32> -> vector<32x16xf32>
    %17 = arith.truncf %16 : vector<32x16xf32> to vector<32x16xbf16>
    %cst_7 = arith.constant dense<0.000000e+00> : vector<32x32xf32>
    %18 = tpu.matmul %17, %4, %cst_7 {dimension_numbers = #tpu.dot_dimension_numbers<[1], [0], [0], [1], [0, 0, 1, 1], [], []>} : vector<32x16xbf16>, vector<16x32xbf16>, vector<32x32xf32> -> vector<32x32xf32>
    %c0_8 = arith.constant 0 : index
    %19 = memref.load %arg3[%c0_8] : memref<3xf32, #tpu.memory_space<smem>>
    %20 = vector.broadcast %19 : f32 to vector<32x32xf32>
    %21 = arith.mulf %18, %20 : vector<32x32xf32>
    %c0_9 = arith.constant 0 : index
    %22 = memref.load %arg2[%c0_9] : memref<3xf32, #tpu.memory_space<smem>>
    %23 = vector.broadcast %22 : f32 to vector<32x32xf32>
    %24 = arith.addf %21, %23 : vector<32x32xf32>
    %cst_10 = arith.constant 0.000000e+00 : f32
    %25 = vector.broadcast %cst_10 : f32 to vector<32x32xf32>
    %26 = arith.select %13, %24, %25 : vector<32x32xi1>, vector<32x32xf32>
    %c0_11 = arith.constant 0 : index
    %c0_12 = arith.constant 0 : index
    %c0_13 = arith.constant 0 : index
    %c0_14 = arith.constant 0 : index
    %27 = vector.load %arg7[%c0_11, %c0_12, %c0_13, %c0_14] : memref<1x3x32x32xf32, #tpu.memory_space<vmem>>, vector<1x1x32x32xf32>
    %28 = vector.shape_cast %27 : vector<1x1x32x32xf32> to vector<32x32xf32>
    %29 = vector.shape_cast %26 : vector<32x32xf32> to vector<1x1x32x32xf32>
    tpu.vector_store %arg7[%c0_11, %c0_12, %c0_13, %c0_14], %29 {strides = array<i32>} : memref<1x3x32x32xf32, #tpu.memory_space<vmem>>, vector<1x1x32x32xf32>,
    %c0_15 = arith.constant 0 : index
    %c1 = arith.constant 1 : index
    %c0_16 = arith.constant 0 : index
    %c0_17 = arith.constant 0 : index
    %30 = vector.load %arg4[%c0_15, %c1, %c0_16, %c0_17] : memref<1x3x16x16xbf16, #tpu.memory_space<vmem>>, vector<1x1x16x16xbf16>
    %31 = vector.shape_cast %30 : vector<1x1x16x16xbf16> to vector<16x16xbf16>
    %cst_18 = arith.constant dense<0.000000e+00> : vector<32x16xf32>
    %32 = tpu.matmul %3, %31, %cst_18 {dimension_numbers = #tpu.dot_dimension_numbers<[1], [0], [0], [1], [0, 0, 1, 1], [], []>} : vector<32x16xbf16>, vector<16x16xbf16>, vector<32x16xf32> -> vector<32x16xf32>
    %33 = arith.truncf %32 : vector<32x16xf32> to vector<32x16xbf16>
    %cst_19 = arith.constant dense<0.000000e+00> : vector<32x32xf32>
    %34 = tpu.matmul %33, %4, %cst_19 {dimension_numbers = #tpu.dot_dimension_numbers<[1], [0], [0], [1], [0, 0, 1, 1], [], []>} : vector<32x16xbf16>, vector<16x32xbf16>, vector<32x32xf32> -> vector<32x32xf32>
    %c1_20 = arith.constant 1 : index
    %35 = memref.load %arg3[%c1_20] : memref<3xf32, #tpu.memory_space<smem>>
    %36 = vector.broadcast %35 : f32 to vector<32x32xf32>
    %37 = arith.mulf %34, %36 : vector<32x32xf32>
    %c1_21 = arith.constant 1 : index
    %38 = memref.load %arg2[%c1_21] : memref<3xf32, #tpu.memory_space<smem>>
    %39 = vector.broadcast %38 : f32 to vector<32x32xf32>
    %40 = arith.addf %37, %39 : vector<32x32xf32>
    %cst_22 = arith.constant 0.000000e+00 : f32
    %41 = vector.broadcast %cst_22 : f32 to vector<32x32xf32>
    %42 = arith.select %13, %40, %41 : vector<32x32xi1>, vector<32x32xf32>
    %c0_23 = arith.constant 0 : index
    %c1_24 = arith.constant 1 : index
    %c0_25 = arith.constant 0 : index
    %c0_26 = arith.constant 0 : index
    %43 = vector.load %arg7[%c0_23, %c1_24, %c0_25, %c0_26] : memref<1x3x32x32xf32, #tpu.memory_space<vmem>>, vector<1x1x32x32xf32>
    %44 = vector.shape_cast %43 : vector<1x1x32x32xf32> to vector<32x32xf32>
    %45 = vector.shape_cast %42 : vector<32x32xf32> to vector<1x1x32x32xf32>
    tpu.vector_store %arg7[%c0_23, %c1_24, %c0_25, %c0_26], %45 {strides = array<i32>} : memref<1x3x32x32xf32, #tpu.memory_space<vmem>>, vector<1x1x32x32xf32>,
    %c0_27 = arith.constant 0 : index
    %c2 = arith.constant 2 : index
    %c0_28 = arith.constant 0 : index
    %c0_29 = arith.constant 0 : index
    %46 = vector.load %arg4[%c0_27, %c2, %c0_28, %c0_29] : memref<1x3x16x16xbf16, #tpu.memory_space<vmem>>, vector<1x1x16x16xbf16>
    %47 = vector.shape_cast %46 : vector<1x1x16x16xbf16> to vector<16x16xbf16>
    %cst_30 = arith.constant dense<0.000000e+00> : vector<32x16xf32>
    %48 = tpu.matmul %3, %47, %cst_30 {dimension_numbers = #tpu.dot_dimension_numbers<[1], [0], [0], [1], [0, 0, 1, 1], [], []>} : vector<32x16xbf16>, vector<16x16xbf16>, vector<32x16xf32> -> vector<32x16xf32>
    %49 = arith.truncf %48 : vector<32x16xf32> to vector<32x16xbf16>
    %cst_31 = arith.constant dense<0.000000e+00> : vector<32x32xf32>
    %50 = tpu.matmul %49, %4, %cst_31 {dimension_numbers = #tpu.dot_dimension_numbers<[1], [0], [0], [1], [0, 0, 1, 1], [], []>} : vector<32x16xbf16>, vector<16x32xbf16>, vector<32x32xf32> -> vector<32x32xf32>
    %c2_32 = arith.constant 2 : index
    %51 = memref.load %arg3[%c2_32] : memref<3xf32, #tpu.memory_space<smem>>
    %52 = vector.broadcast %51 : f32 to vector<32x32xf32>
    %53 = arith.mulf %50, %52 : vector<32x32xf32>
    %c2_33 = arith.constant 2 : index
    %54 = memref.load %arg2[%c2_33] : memref<3xf32, #tpu.memory_space<smem>>
    %55 = vector.broadcast %54 : f32 to vector<32x32xf32>
    %56 = arith.addf %53, %55 : vector<32x32xf32>
    %cst_34 = arith.constant 0.000000e+00 : f32
    %57 = vector.broadcast %cst_34 : f32 to vector<32x32xf32>
    %58 = arith.select %13, %56, %57 : vector<32x32xi1>, vector<32x32xf32>
    %c0_35 = arith.constant 0 : index
    %c2_36 = arith.constant 2 : index
    %c0_37 = arith.constant 0 : index
    %c0_38 = arith.constant 0 : index
    %59 = vector.load %arg7[%c0_35, %c2_36, %c0_37, %c0_38] : memref<1x3x32x32xf32, #tpu.memory_space<vmem>>, vector<1x1x32x32xf32>
    %60 = vector.shape_cast %59 : vector<1x1x32x32xf32> to vector<32x32xf32>
    %61 = vector.shape_cast %58 : vector<32x32xf32> to vector<1x1x32x32xf32>
    tpu.vector_store %arg7[%c0_35, %c2_36, %c0_37, %c0_38], %61 {strides = array<i32>} : memref<1x3x32x32xf32, #tpu.memory_space<vmem>>, vector<1x1x32x32xf32>,
    return
  }
  func.func @transform_0(%arg0: i32, %arg1: i32) -> i32 {
    %c0_i32 = arith.constant 0 : i32
    %c0_i32_0 = arith.constant 0 : i32
    return %c0_i32 : i32
  }
  func.func @transform_1(%arg0: i32, %arg1: i32) -> i32 {
    %c0_i32 = arith.constant 0 : i32
    %c0_i32_0 = arith.constant 0 : i32
    return %c0_i32 : i32
  }
  func.func @transform_2(%arg0: i32, %arg1: i32) -> (i32, i32, i32, i32) {
    %c0_i32 = arith.constant 0 : i32
    %c0_i32_0 = arith.constant 0 : i32
    %c0_i32_1 = arith.constant 0 : i32
    %c0_i32_2 = arith.constant 0 : i32
    return %arg0, %c0_i32, %c0_i32_0, %c0_i32_1 : i32, i32, i32, i32
  }
  func.func @transform_3(%arg0: i32, %arg1: i32) -> (i32, i32) {
    %c0_i32 = arith.constant 0 : i32
    %c0_i32_0 = arith.constant 0 : i32
    %c0_i32_1 = arith.constant 0 : i32
    return %c0_i32, %c0_i32_0 : i32, i32
  }
  func.func @transform_4(%arg0: i32, %arg1: i32) -> (i32, i32) {
    %c0_i32 = arith.constant 0 : i32
    %c0_i32_0 = arith.constant 0 : i32
    %c0_i32_1 = arith.constant 0 : i32
    return %c0_i32, %c0_i32_0 : i32, i32
  }
  func.func @transform_5(%arg0: i32, %arg1: i32) -> (i32, i32, i32, i32) {
    %c0_i32 = arith.constant 0 : i32
    %c0_i32_0 = arith.constant 0 : i32
    %c0_i32_1 = arith.constant 0 : i32
    return %arg0, %c0_i32, %arg1, %c0_i32_0 : i32, i32, i32, i32
  }
}

</mosaic_0001>

<llo_original>
// kernel: tpu_custom_call.1
$region0: #{tpu_custom_call.1}
  #allocation0 [shape = 'u32[]', space=smem, size = 0x4, offset = 0x4, fixed_abs, tag = 'smem constant byte address 0x4 - core index']
  #allocation1 [shape = 'u32[144,128]{1,0:T(1,128)}', space=vmem, size = 0x12000, scoped, tag = 'internal scratch']
  %s0 = inlined_call_operand.vmem [shape: f32[3], index: 0, kind: input, shape index: {}]
  %s1 = inlined_call_operand.vmem [shape: f32[3], index: 1, kind: input, shape index: {}]
  %s2 = inlined_call_operand.hbm [shape: bf16[2,3,16,16], index: 2, kind: input, shape index: {}]
  %s3 = inlined_call_operand.vmem [shape: bf16[32,16], index: 3, kind: input, shape index: {}]
  %s4 = inlined_call_operand.vmem [shape: bf16[16,32], index: 4, kind: input, shape index: {}]
  %s5 = inlined_call_operand.hbm [shape: f32[2,3,32,32], index: 5, kind: output, shape index: {}]
  %s6 = sld [smem:[#allocation0]]
  $region65: #{tpu_custom_call.1} parent=0
    _
  %s8 = ssub.s32 1, %s6
  %s9 = scalar_select 0, %s8, %s6
  $region1: #{tpu_custom_call.1} parent=0
    #allocation2 [shape = 'u8[512]{0}', space=smem, size = 0x200, scoped, tag = 'input window, operand 0, single buffered']
    #allocation3 [shape = 's32[2]{0}', space=sflag, size = 0x8, scoped, tag = 'scoped memory for tpu_custom_call.1']
    #allocation4 [shape = 's32[2]{0}', space=sflag, size = 0x8, scoped, tag = 'scoped memory for tpu_custom_call.1']
    #allocation5 [shape = 's32[2]{0}', space=sflag, size = 0x8, scoped, tag = 'scoped memory for tpu_custom_call.1']
    #allocation6 [shape = 'u8[512]{0}', space=smem, size = 0x200, scoped, tag = 'input window, operand 1, single buffered']
    #allocation7 [shape = 's32[1]{0}', space=sflag, size = 0x4, scoped, tag = 'scoped memory for tpu_custom_call.1']
    #allocation8 [shape = 'u8[24576]{0}', space=vmem, size = 0x6000, scoped, tag = 'input window, operand 2']
    #allocation9 [shape = 'u8[98304]{0}', space=vmem, size = 0x18000, scoped, tag = 'output window, operand 0']
    %10 = vsyncpa [#allocation5], 0
    %11 = vsyncpa [#allocation7], 0
    %12 = vsyncpa [#allocation3], 0
    %s13 = scalar_lea.sflag [#allocation3], 1
    %14 = vsyncpa %s13, 0
    %15 = vsyncpa [#allocation4], 0
    %s16 = scalar_lea.sflag [#allocation4], 1
    %17 = vsyncpa %s16, 0
    loop: start=0, step=1, limit=4
    $region2: #{tpu_custom_call.1} parent=1 // loop_pre_header
      _
    $region3: #{tpu_custom_call.1} parent=1 // loop_header
      %s19 = sphi 0, %s23
      %p20 = scmp.ge.s32.totalorder %s19, 4
      %s26 = sphi 0, %s38
      %s27 = sphi 0, %s34
      %s28 = sphi 0, %s26
      %s29 = sphi 0, %s27
      %s30 = sphi 0, %s28
      %s31 = sphi 0, %s29
      %s39 = sphi 0, %s39
      %s41 = sphi 0, %s39
      %s42 = sphi 0, %s41
      %s56 = sphi 0, %s42
      %s60 = sphi 0, %s60
      %s62 = sphi 0, %s60
      %s63 = sphi 0, %s62
      %s77 = sphi 0, %s63
      %s83 = sphi 0, %s85
      %s86 = sphi 0, %s83
      %s87 = sphi 0, %s86
      %s103 = sphi 0, %s87
      %s107 = sphi 0, %s107
      %s109 = sphi 0, %s107
      %s110 = sphi 0, %s109
      %s124 = sphi 0, %s110
      %s128 = sphi 0, %s128
      %s130 = sphi 0, %s128
      %s131 = sphi 0, %s130
      %s145 = sphi 0, %s131
      %s153 = sphi 0, %s155
      %s156 = sphi 0, %s153
      %s157 = sphi 0, %s156
      %s173 = sphi 0, %s157
    $region4: #{tpu_custom_call.1} parent=1 // loop_header_branch
      %22 = sbr.rel (%p20) target = $region8
    $region5: #{tpu_custom_call.1} parent=1 // loop_body
      %s24 = ssub.s32 %s19, 1
      %s25 = ssub.s32 %s19, 2
      %s32 = sadd.s32 1, %s27
      %p33 = scmp.ge.s32.totalorder %s32, 1
      %s34 = scalar_select %p33, 0, %s32
      %s35 = sadd.s32 1, %s26
      %s36 = scalar_select %p33, %s35, %s26
      %p37 = scmp.ge.s32.totalorder %s36, 2
      %s38 = scalar_select %p37, 0, %s36
      %s40 = sadd.s32 %s39, 1
      %p43 = scmp.eq.s32.totalorder %s19, 1
      %p44 = scmp.ne.s32.totalorder %s39, %s41
      %p45 = scmp.eq.s32.totalorder %s19, 0
      %p46 = por %p44, %p45
      %p47 = scmp.ne.s32.totalorder %s39, %s41
      %p48 = scmp.eq.s32.totalorder %s24, 1
      %p49 = por %p47, %p48
      %p50 = scmp.ne.s32.totalorder %s41, %s42
      %p51 = scmp.eq.s32.totalorder %s24, 0
      %p52 = por %p50, %p51
      %p53 = scmp.ne.s32.totalorder %s41, %s42
      %p54 = scmp.eq.s32.totalorder %s25, 1
      %p55 = por %p53, %p54
      %p57 = scmp.ne.s32.totalorder %s42, %s56
      %p58 = scmp.eq.s32.totalorder %s25, 0
      %p59 = por %p57, %p58
      %s61 = sadd.s32 %s60, 1
      %p64 = scmp.eq.s32.totalorder %s19, 1
      %p65 = scmp.ne.s32.totalorder %s60, %s62
      %p66 = scmp.eq.s32.totalorder %s19, 0
      %p67 = por %p65, %p66
      %p68 = scmp.ne.s32.totalorder %s60, %s62
      %p69 = scmp.eq.s32.totalorder %s24, 1
      %p70 = por %p68, %p69
      %p71 = scmp.ne.s32.totalorder %s62, %s63
      %p72 = scmp.eq.s32.totalorder %s24, 0
      %p73 = por %p71, %p72
      %p74 = scmp.ne.s32.totalorder %s62, %s63
      %p75 = scmp.eq.s32.totalorder %s25, 1
      %p76 = por %p74, %p75
      %p78 = scmp.ne.s32.totalorder %s63, %s77
      %p79 = scmp.eq.s32.totalorder %s25, 0
      %p80 = por %p78, %p79
      %s81 = ssub.s32 %s26, %s38
      %p82 = scmp.eq.s32.totalorder %s81, 0
      %s84 = sadd.s32 %s83, 1
      %s85 = scalar_select %p82, %s83, %s84
      %p88 = pneg %p82
      %p89 = scmp.eq.s32.totalorder %s19, 1
      %p90 = por %p88, %p89
      %p91 = scmp.ne.s32.totalorder %s83, %s86
      %p92 = scmp.eq.s32.totalorder %s19, 0
      %p93 = por %p91, %p92
      %p94 = scmp.ne.s32.totalorder %s83, %s86
      %p95 = scmp.eq.s32.totalorder %s24, 1
      %p96 = por %p94, %p95
      %p97 = scmp.ne.s32.totalorder %s86, %s87
      %p98 = scmp.eq.s32.totalorder %s24, 0
      %p99 = por %p97, %p98
      %p100 = scmp.ne.s32.totalorder %s86, %s87
      %p101 = scmp.eq.s32.totalorder %s25, 1
      %p102 = por %p100, %p101
      %p104 = scmp.ne.s32.totalorder %s87, %s103
      %p105 = scmp.eq.s32.totalorder %s25, 0
      %p106 = por %p104, %p105
      %s108 = sadd.s32 %s107, 1
      %p111 = scmp.eq.s32.totalorder %s19, 1
      %p112 = scmp.ne.s32.totalorder %s107, %s109
      %p113 = scmp.eq.s32.totalorder %s19, 0
      %p114 = por %p112, %p113
      %p115 = scmp.ne.s32.totalorder %s107, %s109
      %p116 = scmp.eq.s32.totalorder %s24, 1
      %p117 = por %p115, %p116
      %p118 = scmp.ne.s32.totalorder %s109, %s110
      %p119 = scmp.eq.s32.totalorder %s24, 0
      %p120 = por %p118, %p119
      %p121 = scmp.ne.s32.totalorder %s109, %s110
      %p122 = scmp.eq.s32.totalorder %s25, 1
      %p123 = por %p121, %p122
      %p125 = scmp.ne.s32.totalorder %s110, %s124
      %p126 = scmp.eq.s32.totalorder %s25, 0
      %p127 = por %p125, %p126
      %s129 = sadd.s32 %s128, 1
      %p132 = scmp.eq.s32.totalorder %s19, 1
      %p133 = scmp.ne.s32.totalorder %s128, %s130
      %p134 = scmp.eq.s32.totalorder %s19, 0
      %p135 = por %p133, %p134
      %p136 = scmp.ne.s32.totalorder %s128, %s130
      %p137 = scmp.eq.s32.totalorder %s24, 1
      %p138 = por %p136, %p137
      %p139 = scmp.ne.s32.totalorder %s130, %s131
      %p140 = scmp.eq.s32.totalorder %s24, 0
      %p141 = por %p139, %p140
      %p142 = scmp.ne.s32.totalorder %s130, %s131
      %p143 = scmp.eq.s32.totalorder %s25, 1
      %p144 = por %p142, %p143
      %p146 = scmp.ne.s32.totalorder %s131, %s145
      %p147 = scmp.eq.s32.totalorder %s25, 0
      %p148 = por %p146, %p147
      %s149 = ssub.s32 %s26, %s38
      %s150 = ssub.s32 %s27, %s34
      %s151 = sor.u32 %s149, %s150
      %p152 = scmp.eq.s32.totalorder %s151, 0
      %s154 = sadd.s32 %s153, 1
      %s155 = scalar_select %p152, %s153, %s154
      %p158 = pneg %p152
      %p159 = scmp.eq.s32.totalorder %s19, 1
      %p160 = por %p158, %p159
      %p161 = scmp.ne.s32.totalorder %s153, %s156
      %p162 = scmp.eq.s32.totalorder %s19, 0
      %p163 = por %p161, %p162
      %p164 = scmp.ne.s32.totalorder %s153, %s156
      %p165 = scmp.eq.s32.totalorder %s24, 1
      %p166 = por %p164, %p165
      %p167 = scmp.ne.s32.totalorder %s156, %s157
      %p168 = scmp.eq.s32.totalorder %s24, 0
      %p169 = por %p167, %p168
      %p170 = scmp.ne.s32.totalorder %s156, %s157
      %p171 = scmp.eq.s32.totalorder %s25, 1
      %p172 = por %p170, %p171
      %p174 = scmp.ne.s32.totalorder %s157, %s173
      %p175 = scmp.eq.s32.totalorder %s25, 0
      %p176 = por %p174, %p175
      %p177 = scmp.le.s32.totalorder 1, %s19
      %p178 = scmp.lt.s32.totalorder %s19, 3
      %p179 = pnand %p177, %p178
      %p180 = pneg %p179
      // Predicated region
      $region9: #{tpu_custom_call.1} parent=5 // pred_check
        _
      $region10: #{tpu_custom_call.1} parent=5 // pred_check_branch
        %182 = sbr.rel (%p179) target = $region12
      $region11: #{tpu_custom_call.1} parent=5 // pred_region
        %s183 = ssub.s32 %s19, 1
        // Predicated region
        $region13: #{tpu_custom_call.1} parent=11 // pred_check
          %p184 = pneg %p52
        $region14: #{tpu_custom_call.1} parent=11 // pred_check_branch
          %186 = sbr.rel (%p184) target = $region16
        $region15: #{tpu_custom_call.1} parent=11 // pred_region
          %s188 = ssub.s32 16, 16
          %189 = vsyncadd [#allocation5], %s188
          %s191 = sshll.u32 %s0, 4
          %s192 = int_to_ptr.vmem [resolvable:$true] %s191
          %194 = dma.vmem_to_smem %s192, 16, [#allocation2], [#allocation5]
        $region16: #{tpu_custom_call.1} parent=11 // pred_fallthru
          _
        // Predicated region
        $region17: #{tpu_custom_call.1} parent=11 // pred_check
          %p195 = pneg %p73
        $region18: #{tpu_custom_call.1} parent=11 // pred_check_branch
          %197 = sbr.rel (%p195) target = $region20
        $region19: #{tpu_custom_call.1} parent=11 // pred_region
          %s199 = ssub.s32 16, 16
          %200 = vsyncadd [#allocation7], %s199
          %s202 = sshll.u32 %s1, 4
          %s203 = int_to_ptr.vmem [resolvable:$true] %s202
          %205 = dma.vmem_to_smem %s203, 16, [#allocation6], [#allocation7]
        $region20: #{tpu_custom_call.1} parent=11 // pred_fallthru
          _
        // Predicated region
        $region21: #{tpu_custom_call.1} parent=11 // pred_check
          %p206 = pneg %p120
        $region22: #{tpu_custom_call.1} parent=11 // pred_check_branch
          %208 = sbr.rel (%p206) target = $region24
        $region23: #{tpu_custom_call.1} parent=11 // pred_region
          _
        $region24: #{tpu_custom_call.1} parent=11 // pred_fallthru
          _
        // Predicated region
        $region25: #{tpu_custom_call.1} parent=11 // pred_check
          %p209 = pneg %p141
        $region26: #{tpu_custom_call.1} parent=11 // pred_check_branch
          %211 = sbr.rel (%p209) target = $region28
        $region27: #{tpu_custom_call.1} parent=11 // pred_region
          _
        $region28: #{tpu_custom_call.1} parent=11 // pred_fallthru
          _
      $region12: #{tpu_custom_call.1} parent=5 // pred_fallthru
        _
      %p212 = scmp.lt.s32.totalorder %s19, 2
      // Predicated region
      $region29: #{tpu_custom_call.1} parent=5 // pred_check
        %p213 = pneg %p212
      $region30: #{tpu_custom_call.1} parent=5 // pred_check_branch
        %215 = sbr.rel (%p213) target = $region32
      $region31: #{tpu_custom_call.1} parent=5 // pred_region
        // Predicated region
        $region33: #{tpu_custom_call.1} parent=31 // pred_check
          %p216 = pneg %p93
        $region34: #{tpu_custom_call.1} parent=31 // pred_check_branch
          %218 = sbr.rel (%p216) target = $region36
        $region35: #{tpu_custom_call.1} parent=31 // pred_region
          %s219 = sand.u32 %s83, 1
          %s220 = scalar_lea.sflag [#allocation3], %s219
          %s221 = sand.u32 %s83, 1
          %s222 = smul.addr %s221, 24
          %s223 = scalar_lea.vmem [#allocation8], %s222
          %s225 = ssub.s32 384, 384
          %226 = vsyncadd %s220, %s225
          %s227 = smul.addr %s26, 6
          %s228 = smul.addr %s227, 64
          %s229 = scalar_lea.hbm %s2, %s228
          %s230 = sshll.u32 %s223, 4
          %s231 = int_to_ptr.vmem [resolvable:$true] %s230
          %236 = dma.hbm_to_vmem [thread:$0]  %s229, 384, %s231, %s220, 64, 64, 4
        $region36: #{tpu_custom_call.1} parent=31 // pred_fallthru
          _
      $region32: #{tpu_custom_call.1} parent=5 // pred_fallthru
        _
      %p237 = scmp.le.s32.totalorder 1, %s19
      %p238 = scmp.lt.s32.totalorder %s19, 3
      %p239 = pnand %p237, %p238
      %p240 = pneg %p239
      // Predicated region
      $region37: #{tpu_custom_call.1} parent=5 // pred_check
        _
      $region38: #{tpu_custom_call.1} parent=5 // pred_check_branch
        %242 = sbr.rel (%p239) target = $region40
      $region39: #{tpu_custom_call.1} parent=5 // pred_region
        %s243 = ssub.s32 %s19, 1
        // Predicated region
        $region41: #{tpu_custom_call.1} parent=39 // pred_check
          %p244 = pneg %p52
        $region42: #{tpu_custom_call.1} parent=39 // pred_check_branch
          %246 = sbr.rel (%p244) target = $region44
        $region43: #{tpu_custom_call.1} parent=39 // pred_region
          %247 = dma.done [#allocation5], 16
        $region44: #{tpu_custom_call.1} parent=39 // pred_fallthru
          _
        // Predicated region
        $region45: #{tpu_custom_call.1} parent=39 // pred_check
          %p248 = pneg %p73
        $region46: #{tpu_custom_call.1} parent=39 // pred_check_branch
          %250 = sbr.rel (%p248) target = $region48
        $region47: #{tpu_custom_call.1} parent=39 // pred_region
          %251 = dma.done [#allocation7], 16
        $region48: #{tpu_custom_call.1} parent=39 // pred_fallthru
          _
        %s252 = sand.u32 %s86, 1
        %s253 = scalar_lea.sflag [#allocation3], %s252
        %s254 = sand.u32 %s86, 1
        %s255 = smul.addr %s254, 24
        %s256 = scalar_lea.vmem [#allocation8], %s255
        // Predicated region
        $region49: #{tpu_custom_call.1} parent=39 // pred_check
          %p257 = pneg %p99
        $region50: #{tpu_custom_call.1} parent=39 // pred_check_branch
          %259 = sbr.rel (%p257) target = $region52
        $region51: #{tpu_custom_call.1} parent=39 // pred_region
          %260 = dma.done %s253, 384
        $region52: #{tpu_custom_call.1} parent=39 // pred_fallthru
          _
        %261 = sfence
        %p262 = pneg %p52
        %p263 = pneg %p49
        %p264 = pneg %p73
        %p265 = pneg %p70
        %s266 = sand.u32 %s86, 1
        %s267 = scalar_lea.sflag [#allocation3], %s266
        %s268 = sand.u32 %s86, 1
        %s269 = smul.addr %s268, 24
        %s270 = scalar_lea.vmem [#allocation8], %s269
        %p271 = pneg %p99
        %p272 = pneg %p96
        %p273 = pneg %p120
        %p274 = pneg %p117
        %p275 = pneg %p141
        %p276 = pneg %p138
        %p277 = pneg %p169
        %p278 = pneg %p166
        %s279 = sand.u32 %s156, 1
        %s280 = scalar_lea.sflag [#allocation4], %s279
        %s281 = sand.u32 %s156, 1
        %s282 = smul.addr %s281, 96
        %s283 = scalar_lea.vmem [#allocation9], %s282
        %s284 = smul.u32 4, %s29
        %s286 = smul.u32 %s29, 32
        %s287 = sshra.s32 %s286, 3
        %s288 = sand.u32 %s286, 7
        %s289 = smul.addr %s287, 4
        %s290 = scalar_lea.vmem %s3, %s289
        %v291 = vld [vmem:[%s290] sm:$0xf]
        %v292 = vld [vmem:[%s290 + $0x4] sm:$0xf]
        %v293 = vld [vmem:[%s290 + $0x8] sm:$0xf]
        %v294 = vld [vmem:[%s290 + $0xc] sm:$0xf]
        %v295 = vld [vmem:[%s4] sm:$0xf]
        %v296 = vld [vmem:[%s4 + $0x4] sm:$0xf]
        %v297 = vlaneseq
        %v298 = vshrl.u32 %v297, 7
        %v299 = vadd.s32 %v298, 8
        %v300 = vadd.s32 %v298, 16
        %v301 = vadd.s32 %v298, 24
        %v302 = vstv %s286
        %v303 = vadd.s32 %v302, %v298
        %v304 = vadd.s32 %v302, %v299
        %v305 = vadd.s32 %v302, %v300
        %v306 = vadd.s32 %v302, %v301
        %v307 = vlaneseq
        %v308 = vand.u32 %v307, 127
        %vm309 = vcmp.lt.s32.totalorder %v303, 24
        %vm310 = vcmp.lt.s32.totalorder %v304, 24
        %vm311 = vcmp.lt.s32.totalorder %v305, 24
        %vm312 = vcmp.lt.s32.totalorder %v306, 24
        %vm313 = vcmp.lt.s32.totalorder %v308, 24
        %vm314 = vmand %vm309, %vm313
        %vm315 = vmand %vm310, %vm313
        %vm316 = vmand %vm311, %vm313
        %vm317 = vmand %vm312, %vm313
        %v318 = vld [vmem:[%s256] sm:$0xf]
        %v319 = vld [vmem:[%s256 + $0x4] sm:$0xf]
        %v324 = vunpack.c.l.b16 %v291
        %v325 = vunpack.c.l.b16 %v292
        %v326 = vunpack.c.l.b16 %v293
        %v327 = vunpack.c.l.b16 %v294
        %v328 = vpack.c.b16 %v325, %v324
        %v329 = vpack.c.b16 %v327, %v326
        %v332 = vunpack.c.l.b16 %v318
        %v333 = vunpack.c.l.b16 %v319
        %v334 = vpack.c.b16 %v333, %v332
        %vm336 = vcmask 130048
        %v338 = vsel %vm336, %v328, 0
        %v341 = vsel %vm336, %v329, 0
        %343 = vmatprep.subr.bf16.mxu0 0
        %344 = vmatpush1.bf16.msra.mxu0 %v334
        %345 = vmatprep.subr.bf16.mxu0 0
        %346 = vmatpush1.bf16.msra.mxu0 0
        %347 = vmatprep.subr.bf16.mxu0 0
        %348 = vmatpush1.bf16.msra.mxu0 0
        %349 = vmatprep.subr.bf16.mxu0 0
        %350 = vmatpush1.bf16.msra.mxu0 0
        %351 = vmatprep.subr.bf16.mxu0 0
        %352 = vmatpush1.bf16.msra.mxu0 0
        %353 = vmatprep.subr.bf16.mxu0 0
        %354 = vmatpush1.bf16.msra.mxu0 0
        %355 = vmatprep.subr.bf16.mxu0 0
        %356 = vmatpush1.bf16.msra.mxu0 0
        %357 = vmatprep.subr.bf16.mxu0 0
        %358 = vmatpush1.bf16.msra.mxu0 0
        %359 = vmatprep.subr.bf16.mxu0 0
        %360 = vmatpush1.bf16.msra.mxu0 0
        %361 = vmatprep.subr.bf16.mxu0 0
        %362 = vmatpush1.bf16.msra.mxu0 0
        %363 = vmatprep.subr.bf16.mxu0 0
        %364 = vmatpush1.bf16.msra.mxu0 0
        %365 = vmatprep.subr.bf16.mxu0 0
        %366 = vmatpush1.bf16.msra.mxu0 0
        %367 = vmatprep.subr.bf16.mxu0 0
        %368 = vmatpush1.bf16.msra.mxu0 0
        %369 = vmatprep.subr.bf16.mxu0 0
        %370 = vmatpush1.bf16.msra.mxu0 0
        %371 = vmatprep.subr.bf16.mxu0 0
        %372 = vmatpush1.bf16.msra.mxu0 0
        %373 = vmatprep.subr.bf16.mxu0 0
        %374 = vmatpush1.bf16.msra.mxu0 0
        %375 = vmatprep.mubr.bf16.mxu0 0
        %376 = vmatmul.mubr.bf16.gmra.mrb[0].mxu0 %v338
        %v377 = vpop.f32.mrb[0].mxu0
        %v378 = vadd.f32 0.0, %v377
        %v379 = vpop.f32.mrb[0].mxu0
        %v380 = vpop.f32.mrb[0].mxu0
        %v381 = vadd.f32 0.0, %v380
        %v382 = vpop.f32.mrb[0].mxu0
        %383 = vmatprep.mubr.bf16.mxu0 0
        %384 = vmatmul.mubr.bf16.gmra.mrb[0].mxu0 %v341
        %v385 = vpop.f32.mrb[0].mxu0
        %v386 = vadd.f32 0.0, %v385
        %v387 = vpop.f32.mrb[0].mxu0
        %v388 = vpop.f32.mrb[0].mxu0
        %v389 = vadd.f32 0.0, %v388
        %v390 = vpop.f32.mrb[0].mxu0
        %391 = vdwg.mxu0
        %v392 = vpack.c.bf16 %v381, %v378
        %v393 = vpack.c.bf16 %v389, %v386
        %v396 = vunpack.c.l.b16 %v295
        %v397 = vunpack.c.l.b16 %v296
        %v398 = vpack.c.b16 %v397, %v396
        %v401 = vsel %vm336, %v392, 0
        %v404 = vsel %vm336, %v393, 0
        %406 = vmatprep.subr.bf16.mxu0 0
        %407 = vmatpush1.bf16.msra.mxu0 %v398
        %408 = vmatprep.subr.bf16.mxu0 0
        %409 = vmatpush1.bf16.msra.mxu0 0
        %410 = vmatprep.subr.bf16.mxu0 0
        %411 = vmatpush1.bf16.msra.mxu0 0
        %412 = vmatprep.subr.bf16.mxu0 0
        %413 = vmatpush1.bf16.msra.mxu0 0
        %414 = vmatprep.subr.bf16.mxu0 0
        %415 = vmatpush1.bf16.msra.mxu0 0
        %416 = vmatprep.subr.bf16.mxu0 0
        %417 = vmatpush1.bf16.msra.mxu0 0
        %418 = vmatprep.subr.bf16.mxu0 0
        %419 = vmatpush1.bf16.msra.mxu0 0
        %420 = vmatprep.subr.bf16.mxu0 0
        %421 = vmatpush1.bf16.msra.mxu0 0
        %422 = vmatprep.subr.bf16.mxu0 0
        %423 = vmatpush1.bf16.msra.mxu0 0
        %424 = vmatprep.subr.bf16.mxu0 0
        %425 = vmatpush1.bf16.msra.mxu0 0
        %426 = vmatprep.subr.bf16.mxu0 0
        %427 = vmatpush1.bf16.msra.mxu0 0
        %428 = vmatprep.subr.bf16.mxu0 0
        %429 = vmatpush1.bf16.msra.mxu0 0
        %430 = vmatprep.subr.bf16.mxu0 0
        %431 = vmatpush1.bf16.msra.mxu0 0
        %432 = vmatprep.subr.bf16.mxu0 0
        %433 = vmatpush1.bf16.msra.mxu0 0
        %434 = vmatprep.subr.bf16.mxu0 0
        %435 = vmatpush1.bf16.msra.mxu0 0
        %436 = vmatprep.subr.bf16.mxu0 0
        %437 = vmatpush1.bf16.msra.mxu0 0
        %438 = vmatprep.mubr.bf16.mxu0 0
        %439 = vmatmul.mubr.bf16.gmra.mrb[0].mxu0 %v401
        %v440 = vpop.f32.mrb[0].mxu0
        %v441 = vadd.f32 0.0, %v440
        %v442 = vpop.f32.mrb[0].mxu0
        %v443 = vpop.f32.mrb[0].mxu0
        %v444 = vadd.f32 0.0, %v443
        %v445 = vpop.f32.mrb[0].mxu0
        %446 = vmatprep.mubr.bf16.mxu0 0
        %447 = vmatmul.mubr.bf16.gmra.mrb[0].mxu0 %v404
        %v448 = vpop.f32.mrb[0].mxu0
        %v449 = vadd.f32 0.0, %v448
        %v450 = vpop.f32.mrb[0].mxu0
        %v451 = vpop.f32.mrb[0].mxu0
        %v452 = vadd.f32 0.0, %v451
        %v453 = vpop.f32.mrb[0].mxu0
        %454 = vdwg.mxu0
        %s455 = sld [smem:[#allocation6]]
        %v456 = vstv %s455
        %v457 = vmul.f32 %v441, %v456
        %v458 = vmul.f32 %v444, %v456
        %v459 = vmul.f32 %v449, %v456
        %v460 = vmul.f32 %v452, %v456
        %s461 = sld [smem:[#allocation2]]
        %v462 = vstv %s461
        %v463 = vadd.f32 %v457, %v462
        %v464 = vadd.f32 %v458, %v462
        %v465 = vadd.f32 %v459, %v462
        %v466 = vadd.f32 %v460, %v462
        %v467 = vsel %vm314, %v463, 0.0
        %v468 = vsel %vm315, %v464, 0.0
        %v469 = vsel %vm316, %v465, 0.0
        %v470 = vsel %vm317, %v466, 0.0
        %vm471 = vcmask 261120
        %472 = vst.msk [vmem:[%s283] sm:$0xff] %vm471, %v467
        %473 = vst.msk [vmem:[%s283 + $0x8] sm:$0xff] %vm471, %v468
        %474 = vst.msk [vmem:[%s283 + $0x10] sm:$0xff] %vm471, %v469
        %475 = vst.msk [vmem:[%s283 + $0x18] sm:$0xff] %vm471, %v470
        %s476 = scalar_lea.vmem %s256, 8 [#allocation8]
        %v477 = vld [vmem:[%s476] sm:$0xf]
        %v478 = vld [vmem:[%s476 + $0x4] sm:$0xf]
        %v481 = vunpack.c.l.b16 %v477
        %v482 = vunpack.c.l.b16 %v478
        %v483 = vpack.c.b16 %v482, %v481
        %485 = vmatprep.subr.bf16.mxu0 0
        %486 = vmatpush1.bf16.msra.mxu0 %v483
        %487 = vmatprep.subr.bf16.mxu0 0
        %488 = vmatpush1.bf16.msra.mxu0 0
        %489 = vmatprep.subr.bf16.mxu0 0
        %490 = vmatpush1.bf16.msra.mxu0 0
        %491 = vmatprep.subr.bf16.mxu0 0
        %492 = vmatpush1.bf16.msra.mxu0 0
        %493 = vmatprep.subr.bf16.mxu0 0
        %494 = vmatpush1.bf16.msra.mxu0 0
        %495 = vmatprep.subr.bf16.mxu0 0
        %496 = vmatpush1.bf16.msra.mxu0 0
        %497 = vmatprep.subr.bf16.mxu0 0
        %498 = vmatpush1.bf16.msra.mxu0 0
        %499 = vmatprep.subr.bf16.mxu0 0
        %500 = vmatpush1.bf16.msra.mxu0 0
        %501 = vmatprep.subr.bf16.mxu0 0
        %502 = vmatpush1.bf16.msra.mxu0 0
        %503 = vmatprep.subr.bf16.mxu0 0
        %504 = vmatpush1.bf16.msra.mxu0 0
        %505 = vmatprep.subr.bf16.mxu0 0
        %506 = vmatpush1.bf16.msra.mxu0 0
        %507 = vmatprep.subr.bf16.mxu0 0
        %508 = vmatpush1.bf16.msra.mxu0 0
        %509 = vmatprep.subr.bf16.mxu0 0
        %510 = vmatpush1.bf16.msra.mxu0 0
        %511 = vmatprep.subr.bf16.mxu0 0
        %512 = vmatpush1.bf16.msra.mxu0 0
        %513 = vmatprep.subr.bf16.mxu0 0
        %514 = vmatpush1.bf16.msra.mxu0 0
        %515 = vmatprep.subr.bf16.mxu0 0
        %516 = vmatpush1.bf16.msra.mxu0 0
        %517 = vmatprep.mubr.bf16.mxu0 0
        %518 = vmatmul.mubr.bf16.gmra.mrb[0].mxu0 %v338
        %v519 = vpop.f32.mrb[0].mxu0
        %v520 = vadd.f32 0.0, %v519
        %v521 = vpop.f32.mrb[0].mxu0
        %v522 = vpop.f32.mrb[0].mxu0
        %v523 = vadd.f32 0.0, %v522
        %v524 = vpop.f32.mrb[0].mxu0
        %525 = vmatprep.mubr.bf16.mxu0 0
        %526 = vmatmul.mubr.bf16.gmra.mrb[0].mxu0 %v341
        %v527 = vpop.f32.mrb[0].mxu0
        %v528 = vadd.f32 0.0, %v527
        %v529 = vpop.f32.mrb[0].mxu0
        %v530 = vpop.f32.mrb[0].mxu0
        %v531 = vadd.f32 0.0, %v530
        %v532 = vpop.f32.mrb[0].mxu0
        %533 = vdwg.mxu0
        %v534 = vpack.c.bf16 %v523, %v520
        %v535 = vpack.c.bf16 %v531, %v528
        %v537 = vsel %vm336, %v534, 0
        %v540 = vsel %vm336, %v535, 0
        %542 = vmatprep.subr.bf16.mxu0 0
        %543 = vmatpush1.bf16.msra.mxu0 %v398
        %544 = vmatprep.subr.bf16.mxu0 0
        %545 = vmatpush1.bf16.msra.mxu0 0
        %546 = vmatprep.subr.bf16.mxu0 0
        %547 = vmatpush1.bf16.msra.mxu0 0
        %548 = vmatprep.subr.bf16.mxu0 0
        %549 = vmatpush1.bf16.msra.mxu0 0
        %550 = vmatprep.subr.bf16.mxu0 0
        %551 = vmatpush1.bf16.msra.mxu0 0
        %552 = vmatprep.subr.bf16.mxu0 0
        %553 = vmatpush1.bf16.msra.mxu0 0
        %554 = vmatprep.subr.bf16.mxu0 0
        %555 = vmatpush1.bf16.msra.mxu0 0
        %556 = vmatprep.subr.bf16.mxu0 0
        %557 = vmatpush1.bf16.msra.mxu0 0
        %558 = vmatprep.subr.bf16.mxu0 0
        %559 = vmatpush1.bf16.msra.mxu0 0
        %560 = vmatprep.subr.bf16.mxu0 0
        %561 = vmatpush1.bf16.msra.mxu0 0
        %562 = vmatprep.subr.bf16.mxu0 0
        %563 = vmatpush1.bf16.msra.mxu0 0
        %564 = vmatprep.subr.bf16.mxu0 0
        %565 = vmatpush1.bf16.msra.mxu0 0
        %566 = vmatprep.subr.bf16.mxu0 0
        %567 = vmatpush1.bf16.msra.mxu0 0
        %568 = vmatprep.subr.bf16.mxu0 0
        %569 = vmatpush1.bf16.msra.mxu0 0
        %570 = vmatprep.subr.bf16.mxu0 0
        %571 = vmatpush1.bf16.msra.mxu0 0
        %572 = vmatprep.subr.bf16.mxu0 0
        %573 = vmatpush1.bf16.msra.mxu0 0
        %574 = vmatprep.mubr.bf16.mxu0 0
        %575 = vmatmul.mubr.bf16.gmra.mrb[0].mxu0 %v537
        %v576 = vpop.f32.mrb[0].mxu0
        %v577 = vadd.f32 0.0, %v576
        %v578 = vpop.f32.mrb[0].mxu0
        %v579 = vpop.f32.mrb[0].mxu0
        %v580 = vadd.f32 0.0, %v579
        %v581 = vpop.f32.mrb[0].mxu0
        %582 = vmatprep.mubr.bf16.mxu0 0
        %583 = vmatmul.mubr.bf16.gmra.mrb[0].mxu0 %v540
        %v584 = vpop.f32.mrb[0].mxu0
        %v585 = vadd.f32 0.0, %v584
        %v586 = vpop.f32.mrb[0].mxu0
        %v587 = vpop.f32.mrb[0].mxu0
        %v588 = vadd.f32 0.0, %v587
        %v589 = vpop.f32.mrb[0].mxu0
        %590 = vdwg.mxu0
        %s591 = sld [smem:[#allocation6 + $0x1]]
        %v592 = vstv %s591
        %v593 = vmul.f32 %v577, %v592
        %v594 = vmul.f32 %v580, %v592
        %v595 = vmul.f32 %v585, %v592
        %v596 = vmul.f32 %v588, %v592
        %s597 = sld [smem:[#allocation2 + $0x1]]
        %v598 = vstv %s597
        %v599 = vadd.f32 %v593, %v598
        %v600 = vadd.f32 %v594, %v598
        %v601 = vadd.f32 %v595, %v598
        %v602 = vadd.f32 %v596, %v598
        %v603 = vsel %vm314, %v599, 0.0
        %v604 = vsel %vm315, %v600, 0.0
        %v605 = vsel %vm316, %v601, 0.0
        %v606 = vsel %vm317, %v602, 0.0
        %s607 = scalar_lea.vmem %s283, 32 [#allocation9]
        %608 = vst.msk [vmem:[%s607] sm:$0xff] %vm471, %v603
        %609 = vst.msk [vmem:[%s607 + $0x8] sm:$0xff] %vm471, %v604
        %610 = vst.msk [vmem:[%s607 + $0x10] sm:$0xff] %vm471, %v605
        %611 = vst.msk [vmem:[%s607 + $0x18] sm:$0xff] %vm471, %v606
        %s612 = scalar_lea.vmem %s256, 16 [#allocation8]
        %v613 = vld [vmem:[%s612] sm:$0xf]
        %v614 = vld [vmem:[%s612 + $0x4] sm:$0xf]
        %v617 = vunpack.c.l.b16 %v613
        %v618 = vunpack.c.l.b16 %v614
        %v619 = vpack.c.b16 %v618, %v617
        %621 = vmatprep.subr.bf16.mxu0 0
        %622 = vmatpush1.bf16.msra.mxu0 %v619
        %623 = vmatprep.subr.bf16.mxu0 0
        %624 = vmatpush1.bf16.msra.mxu0 0
        %625 = vmatprep.subr.bf16.mxu0 0
        %626 = vmatpush1.bf16.msra.mxu0 0
        %627 = vmatprep.subr.bf16.mxu0 0
        %628 = vmatpush1.bf16.msra.mxu0 0
        %629 = vmatprep.subr.bf16.mxu0 0
        %630 = vmatpush1.bf16.msra.mxu0 0
        %631 = vmatprep.subr.bf16.mxu0 0
        %632 = vmatpush1.bf16.msra.mxu0 0
        %633 = vmatprep.subr.bf16.mxu0 0
        %634 = vmatpush1.bf16.msra.mxu0 0
        %635 = vmatprep.subr.bf16.mxu0 0
        %636 = vmatpush1.bf16.msra.mxu0 0
        %637 = vmatprep.subr.bf16.mxu0 0
        %638 = vmatpush1.bf16.msra.mxu0 0
        %639 = vmatprep.subr.bf16.mxu0 0
        %640 = vmatpush1.bf16.msra.mxu0 0
        %641 = vmatprep.subr.bf16.mxu0 0
        %642 = vmatpush1.bf16.msra.mxu0 0
        %643 = vmatprep.subr.bf16.mxu0 0
        %644 = vmatpush1.bf16.msra.mxu0 0
        %645 = vmatprep.subr.bf16.mxu0 0
        %646 = vmatpush1.bf16.msra.mxu0 0
        %647 = vmatprep.subr.bf16.mxu0 0
        %648 = vmatpush1.bf16.msra.mxu0 0
        %649 = vmatprep.subr.bf16.mxu0 0
        %650 = vmatpush1.bf16.msra.mxu0 0
        %651 = vmatprep.subr.bf16.mxu0 0
        %652 = vmatpush1.bf16.msra.mxu0 0
        %653 = vmatprep.mubr.bf16.mxu0 0
        %654 = vmatmul.mubr.bf16.gmra.mrb[0].mxu0 %v338
        %v655 = vpop.f32.mrb[0].mxu0
        %v656 = vadd.f32 0.0, %v655
        %v657 = vpop.f32.mrb[0].mxu0
        %v658 = vpop.f32.mrb[0].mxu0
        %v659 = vadd.f32 0.0, %v658
        %v660 = vpop.f32.mrb[0].mxu0
        %661 = vmatprep.mubr.bf16.mxu0 0
        %662 = vmatmul.mubr.bf16.gmra.mrb[0].mxu0 %v341
        %v663 = vpop.f32.mrb[0].mxu0
        %v664 = vadd.f32 0.0, %v663
        %v665 = vpop.f32.mrb[0].mxu0
        %v666 = vpop.f32.mrb[0].mxu0
        %v667 = vadd.f32 0.0, %v666
        %v668 = vpop.f32.mrb[0].mxu0
        %669 = vdwg.mxu0
        %v670 = vpack.c.bf16 %v659, %v656
        %v671 = vpack.c.bf16 %v667, %v664
        %v673 = vsel %vm336, %v670, 0
        %v676 = vsel %vm336, %v671, 0
        %678 = vmatprep.subr.bf16.mxu0 0
        %679 = vmatpush1.bf16.msra.mxu0 %v398
        %680 = vmatprep.subr.bf16.mxu0 0
        %681 = vmatpush1.bf16.msra.mxu0 0
        %682 = vmatprep.subr.bf16.mxu0 0
        %683 = vmatpush1.bf16.msra.mxu0 0
        %684 = vmatprep.subr.bf16.mxu0 0
        %685 = vmatpush1.bf16.msra.mxu0 0
        %686 = vmatprep.subr.bf16.mxu0 0
        %687 = vmatpush1.bf16.msra.mxu0 0
        %688 = vmatprep.subr.bf16.mxu0 0
        %689 = vmatpush1.bf16.msra.mxu0 0
        %690 = vmatprep.subr.bf16.mxu0 0
        %691 = vmatpush1.bf16.msra.mxu0 0
        %692 = vmatprep.subr.bf16.mxu0 0
        %693 = vmatpush1.bf16.msra.mxu0 0
        %694 = vmatprep.subr.bf16.mxu0 0
        %695 = vmatpush1.bf16.msra.mxu0 0
        %696 = vmatprep.subr.bf16.mxu0 0
        %697 = vmatpush1.bf16.msra.mxu0 0
        %698 = vmatprep.subr.bf16.mxu0 0
        %699 = vmatpush1.bf16.msra.mxu0 0
        %700 = vmatprep.subr.bf16.mxu0 0
        %701 = vmatpush1.bf16.msra.mxu0 0
        %702 = vmatprep.subr.bf16.mxu0 0
        %703 = vmatpush1.bf16.msra.mxu0 0
        %704 = vmatprep.subr.bf16.mxu0 0
        %705 = vmatpush1.bf16.msra.mxu0 0
        %706 = vmatprep.subr.bf16.mxu0 0
        %707 = vmatpush1.bf16.msra.mxu0 0
        %708 = vmatprep.subr.bf16.mxu0 0
        %709 = vmatpush1.bf16.msra.mxu0 0
        %710 = vmatprep.mubr.bf16.mxu0 0
        %711 = vmatmul.mubr.bf16.gmra.mrb[0].mxu0 %v673
        %v712 = vpop.f32.mrb[0].mxu0
        %v713 = vadd.f32 0.0, %v712
        %v714 = vpop.f32.mrb[0].mxu0
        %v715 = vpop.f32.mrb[0].mxu0
        %v716 = vadd.f32 0.0, %v715
        %v717 = vpop.f32.mrb[0].mxu0
        %718 = vmatprep.mubr.bf16.mxu0 0
        %719 = vmatmul.mubr.bf16.gmra.mrb[0].mxu0 %v676
        %v720 = vpop.f32.mrb[0].mxu0
        %v721 = vadd.f32 0.0, %v720
        %v722 = vpop.f32.mrb[0].mxu0
        %v723 = vpop.f32.mrb[0].mxu0
        %v724 = vadd.f32 0.0, %v723
        %v725 = vpop.f32.mrb[0].mxu0
        %726 = vdwg.mxu0
        %s727 = sld [smem:[#allocation6 + $0x2]]
        %v728 = vstv %s727
        %v729 = vmul.f32 %v713, %v728
        %v730 = vmul.f32 %v716, %v728
        %v731 = vmul.f32 %v721, %v728
        %v732 = vmul.f32 %v724, %v728
        %s733 = sld [smem:[#allocation2 + $0x2]]
        %v734 = vstv %s733
        %v735 = vadd.f32 %v729, %v734
        %v736 = vadd.f32 %v730, %v734
        %v737 = vadd.f32 %v731, %v734
        %v738 = vadd.f32 %v732, %v734
        %v739 = vsel %vm314, %v735, 0.0
        %v740 = vsel %vm315, %v736, 0.0
        %v741 = vsel %vm316, %v737, 0.0
        %v742 = vsel %vm317, %v738, 0.0
        %s743 = scalar_lea.vmem %s283, 64 [#allocation9]
        %744 = vst.msk [vmem:[%s743] sm:$0xff] %vm471, %v739
        %745 = vst.msk [vmem:[%s743 + $0x8] sm:$0xff] %vm471, %v740
        %746 = vst.msk [vmem:[%s743 + $0x10] sm:$0xff] %vm471, %v741
        %747 = vst.msk [vmem:[%s743 + $0x18] sm:$0xff] %vm471, %v742
        %s748 = sand.u32 %s156, 1
        %s749 = scalar_lea.sflag [#allocation4], %s748
        %s750 = sand.u32 %s156, 1
        %s751 = smul.addr %s750, 96
        %s752 = scalar_lea.vmem [#allocation9], %s751
        // Predicated region
        $region53: #{tpu_custom_call.1} parent=39 // pred_check
          %p753 = pneg %p166
        $region54: #{tpu_custom_call.1} parent=39 // pred_check_branch
          %755 = sbr.rel (%p753) target = $region56
        $region55: #{tpu_custom_call.1} parent=39 // pred_region
          %s756 = smul.u32 4, %s29
          %s758 = ssub.s32 1536, 1536
          %759 = vsyncadd %s749, %s758
          %s760 = smul.addr %s28, 12
          %s761 = sadd.s32 %s756, %s760
          %s762 = smul.addr %s761, 128
          %s763 = scalar_lea.hbm %s5, %s762
          %s764 = sshll.u32 %s752, 4
          %s765 = int_to_ptr.vmem [resolvable:$true] %s764
          %770 = dma.vmem_to_hbm [thread:$0]  %s765, 1536, %s763, %s749, 128, 128, 8
        $region56: #{tpu_custom_call.1} parent=39 // pred_fallthru
          _
      $region40: #{tpu_custom_call.1} parent=5 // pred_fallthru
        _
      %p771 = scmp.le.s32.totalorder 2, %s19
      // Predicated region
      $region57: #{tpu_custom_call.1} parent=5 // pred_check
        %p772 = pneg %p771
      $region58: #{tpu_custom_call.1} parent=5 // pred_check_branch
        %774 = sbr.rel (%p772) target = $region60
      $region59: #{tpu_custom_call.1} parent=5 // pred_region
        %s775 = ssub.s32 %s19, 2
        // Predicated region
        $region61: #{tpu_custom_call.1} parent=59 // pred_check
          %p776 = pneg %p172
        $region62: #{tpu_custom_call.1} parent=59 // pred_check_branch
          %778 = sbr.rel (%p776) target = $region64
        $region63: #{tpu_custom_call.1} parent=59 // pred_region
          %s779 = sand.u32 %s157, 1
          %s780 = scalar_lea.sflag [#allocation4], %s779
          %s781 = sand.u32 %s157, 1
          %s782 = smul.addr %s781, 96
          %s783 = scalar_lea.vmem [#allocation9], %s782
          %784 = dma.done %s780, 1536
        $region64: #{tpu_custom_call.1} parent=59 // pred_fallthru
          _
      $region60: #{tpu_custom_call.1} parent=5 // pred_fallthru
        _
    $region6: #{tpu_custom_call.1} parent=1 // loop_footer
      %s23 = sadd.s32 1, %s19
    $region7: #{tpu_custom_call.1} parent=1 // loop_footer_branch
      %18 = sbr.rel target = $region3
    $region8: #{tpu_custom_call.1} parent=1 // loop_exit
      _
    %785 = vsyncpa [#allocation3], 1
    %s786 = scalar_lea.sflag [#allocation3], 1
    %787 = vsyncpa %s786, 1
    %788 = vsyncpa [#allocation4], 1
    %s789 = scalar_lea.sflag [#allocation4], 1
    %790 = vsyncpa %s789, 1
    %791 = vsyncpa [#allocation5], 1
    %s792 = scalar_lea.sflag [#allocation5], 1
    %793 = vsyncpa %s792, 1
    %794 = vsyncpa [#allocation7], 1

</llo_original>
